<compile_context>
chip_gen: v6e
topology: v6e:2x2x1
jax: 0.10.0
libtpu: 0.0.40
codegen_flags: <defaults>
</compile_context>

<pallas_src>
import math

import jax
import jax.numpy as jnp
from jax import lax
from jax.experimental import pallas as pl
from jax.experimental.pallas import tpu as pltpu


# ----------------------------------------------------------------------------
# Counter-based Bernoulli(0.5) mask: murmur3 finalizer on int32.
# Logical shifts are emulated via arithmetic shift + mask so everything stays
# plain int32 (portable across Mosaic lowering and interpret mode).
# ----------------------------------------------------------------------------
_MUR1 = -2048144789   # 0x85EBCA6B as int32
_MUR2 = -1028477387   # 0xC2B2AE35 as int32
_GOLD = -1640531527   # 0x9E3779B9 as int32


def _as_i32(v):
    v &= 0xFFFFFFFF
    return v - (1 << 32) if v >= (1 << 31) else v


def _mix32(h):
    """Murmur3 finalizer (bit-exact; logical shifts via arith-shift + mask)."""
    h = h ^ ((h >> 16) & 0xFFFF)
    h = h * jnp.int32(_MUR1)
    h = h ^ ((h >> 13) & 0x7FFFF)
    h = h * jnp.int32(_MUR2)
    h = h ^ ((h >> 16) & 0xFFFF)
    return h


def _keep_mask(shape, n_cols, row0, seed, salt):
    """P(keep)=0.5 mask for a (rows, cols) tile whose first global row is row0."""
    rows = lax.broadcasted_iota(jnp.int32, shape, 0) + row0
    cols = lax.broadcasted_iota(jnp.int32, shape, 1)
    v = rows * jnp.int32(n_cols) + cols + seed * jnp.int32(_GOLD) + jnp.int32(salt)
    return _mix32(v) >= 0


# ----------------------------------------------------------------------------
# Fused Prenet kernel: matmul -> ReLU -> dropout for every layer, one M-tile
# per grid step, intermediate activations never leave VMEM/vregs.
# ----------------------------------------------------------------------------
def _make_prenet_kernel(n_layers, out_dims_padded, tile_m):
    # Distinct, well-separated per-layer salts (avoid sequential-seed correlation).
    salts = [_as_i32((l + 1) * 0x9E3779B9) for l in range(n_layers)]

    def kernel(seed_ref, x_ref, *rest):
        w_refs = rest[:n_layers]
        o_ref = rest[n_layers]
        seed = seed_ref[0]                                # int32 scalar (SMEM)
        row0 = pl.program_id(0) * tile_m                  # global first row of tile

        h = x_ref[...]                                    # (tile_m, K_pad) f32
        for l in range(n_layers):
            # MXU matmul: bf16 x bf16 -> f32 accumulate (weights already bf16).
            y = jnp.dot(h.astype(jnp.bfloat16), w_refs[l][...],
                        preferred_element_type=jnp.float32)
            y = jnp.maximum(y, 0.0)                       # ReLU (VPU)
            keep = _keep_mask(y.shape, out_dims_padded[l], row0, seed, salts[l])
            h = jnp.where(keep, y + y, 0.0)               # dropout p=0.5, scale 2x
        o_ref[...] = h.astype(o_ref.dtype)

    return kernel


def _pad_to(v, m):
    return ((v + m - 1) // m) * m


# ----------------------------------------------------------------------------
# Wrapper: flatten batch/seq, pad to TPU-friendly shapes, one fused pallas_call.
# ----------------------------------------------------------------------------
def prenet_forward(x, weights, seed=0, *, tile_m=512):
    """x: (B, T, in_dim). weights[l]: (in_l, out_l) arrays (already transposed
    vs. PyTorch's (out, in) layout). Dropout is always active (training mode)."""
    B, T, D = x.shape
    M = B * T
    n_layers = len(weights)
    dims = [D] + [int(w.shape[1]) for w in weights]
    for l, w in enumerate(weights):
        assert int(w.shape[0]) == dims[l], "weight shape mismatch"

    # 128-lane padding for every feature dim (lane-dense stores, full MXU feed).
    dims_p = [_pad_to(d, 128) for d in dims]
    # Row tiling: multiple of 8 sublanes; pad M up to a whole number of tiles.
    tm = min(tile_m, _pad_to(M, 8))
    Mp = _pad_to(M, tm)

    x2 = x.reshape(M, D).astype(jnp.float32)
    x_p = jnp.pad(x2, ((0, Mp - M), (0, dims_p[0] - D)))
    # Weights: zero-pad, store bf16 (half the resident VMEM/DMA bytes; MXU-native).
    ws_p = [
        jnp.pad(w.astype(jnp.float32),
                ((0, dims_p[l] - dims[l]), (0, dims_p[l + 1] - dims[l + 1]))
                ).astype(jnp.bfloat16)
        for l, w in enumerate(weights)
    ]
    seed_arr = jnp.asarray([seed], dtype=jnp.int32)

    kernel = _make_prenet_kernel(n_layers, dims_p[1:], tm)

    in_specs = [pl.BlockSpec((tm, dims_p[0]), lambda i, s: (i, 0))]
    for l in range(n_layers):
        # Constant index_map -> weights stay resident across the M-tile loop.
        in_specs.append(
            pl.BlockSpec((dims_p[l], dims_p[l + 1]), lambda i, s: (0, 0)))

    out = pl.pallas_call(
        kernel,
        out_shape=jax.ShapeDtypeStruct((Mp, dims_p[-1]), jnp.float32),
        grid_spec=pltpu.PrefetchScalarGridSpec(
            num_scalar_prefetch=1,
            grid=(Mp // tm,),
            in_specs=in_specs,
            out_specs=pl.BlockSpec((tm, dims_p[-1]), lambda i, s: (i, 0)),
        ),
        compiler_params=pltpu.CompilerParams(
            # Row tiles are independent -> shard across v7x's two TensorCores.
            dimension_semantics=("parallel",),
        ),
    )(seed_arr, x_p, *ws_p)

    return out[:M, :dims[-1]].reshape(B, T, dims[-1]).astype(x.dtype)


# ----------------------------------------------------------------------------
# Pure-JAX mirror of the kernel math (same hash-based masks) for verification.
# ----------------------------------------------------------------------------
def prenet_reference(x, weights, seed=0):
    B, T, D = x.shape
    M = B * T
    dims = [D] + [int(w.shape[1]) for w in weights]
    dims_p = [_pad_to(d, 128) for d in dims]
    h = x.reshape(M, D).astype(jnp.float32)
    seed_i = jnp.int32(seed)
    for l, w in enumerate(weights):
        y = jnp.dot(h.astype(jnp.bfloat16), w.astype(jnp.bfloat16),
                    preferred_element_type=jnp.float32)
        y = jnp.maximum(y, 0.0)
        salt = _as_i32((l + 1) * 0x9E3779B9)
        keep = _keep_mask(y.shape, dims_p[l + 1], 0, seed_i, salt)
        h = jnp.where(keep, y + y, 0.0)
    return h.reshape(B, T, dims[-1]).astype(x.dtype)


# ----------------------------------------------------------------------------
# Deterministic parameter init (Xavier uniform, gain('linear') == 1.0)
# ----------------------------------------------------------------------------
def init_prenet_params(key, in_dim, sizes):
    in_sizes = [in_dim] + sizes[:-1]
    weights = []
    for i, (fi, fo) in enumerate(zip(in_sizes, sizes)):
        k = jax.random.fold_in(key, i)
        bound = math.sqrt(6.0 / (fi + fo))
        # PyTorch weight is (out, in); store transposed as (in, out) for x @ W.
        w = jax.random.uniform(k, (fi, fo), jnp.float32, -bound, bound)
        weights.append(w)
    return weights


if __name__ == "__main__":
    key = jax.random.PRNGKey(0)

    # Small shapes consistent with Prenet usage: (batch, seq, in_dim)
    B, T, in_dim = 2, 8, 16
    sizes = [32, 32]

    kx, kw = jax.random.split(key)
    x = jax.random.normal(kx, (B, T, in_dim), dtype=jnp.float32)
    weights = init_prenet_params(kw, in_dim, sizes)

    out = prenet_forward(x, weights, seed=0)
    out = jax.block_until_ready(out)

    assert out.shape == (B, T, sizes[-1]), out.shape
    assert bool(jnp.all(jnp.isfinite(out)))
    assert bool(jnp.all(out >= 0.0))          # ReLU + dropout => non-negative

    # Dropout (p=0.5) + ReLU should zero a substantial fraction of outputs.
    zero_frac = float(jnp.mean(out == 0.0))
    assert 0.2 < zero_frac < 1.0, zero_frac

    # Matches the pure-JAX mirror of the kernel math (same masks, same bf16 dot).
    ref = prenet_reference(x, weights, seed=0)
    assert bool(jnp.allclose(out, ref, atol=1e-3, rtol=1e-3)), \
        float(jnp.max(jnp.abs(out - ref)))

    print("KERNEL_OK")
</pallas_src>

<mosaic_0001>
module attributes {stable_mosaic.version = 11 : i64} {
  func.func @kernel(%arg0: i32, %arg1: memref<1xi32, #tpu.memory_space<smem>>, %arg2: memref<16x128xf32, #tpu.memory_space<vmem>>, %arg3: memref<128x128xbf16, #tpu.memory_space<vmem>>, %arg4: memref<128x128xbf16, #tpu.memory_space<vmem>>, %arg5: memref<16x128xf32, #tpu.memory_space<vmem>>) attributes {dimension_semantics = [#tpu.dimension_semantics<parallel>], iteration_bounds = array<i64: 1>, scalar_prefetch = 1 : i64, scratch_operands = 0 : i64, tpu.core_type = #tpu.core_type<tc>, window_params = [{transform_indices = @transform_0, window_bounds = array<i64: 16, 128>}, {pipeline_mode = #tpu.pipeline_mode<synchronous>, transform_indices = @transform_1, window_bounds = array<i64: 128, 128>}, {pipeline_mode = #tpu.pipeline_mode<synchronous>, transform_indices = @transform_2, window_bounds = array<i64: 128, 128>}, {transform_indices = @transform_3, window_bounds = array<i64: 16, 128>}]} {
    %c0 = arith.constant 0 : index
    %0 = memref.load %arg1[%c0] : memref<1xi32, #tpu.memory_space<smem>>
    %c16_i32 = arith.constant 16 : i32
    %1 = arith.muli %arg0, %c16_i32 : i32
    %c0_0 = arith.constant 0 : index
    %c0_1 = arith.constant 0 : index
    %2 = vector.load %arg2[%c0_0, %c0_1] : memref<16x128xf32, #tpu.memory_space<vmem>>, vector<16x128xf32>
    %3 = arith.truncf %2 : vector<16x128xf32> to vector<16x128xbf16>
    %c0_2 = arith.constant 0 : index
    %c0_3 = arith.constant 0 : index
    %4 = vector.load %arg3[%c0_2, %c0_3] : memref<128x128xbf16, #tpu.memory_space<vmem>>, vector<128x128xbf16>
    %cst = arith.constant dense<0.000000e+00> : vector<16x128xf32>
    %5 = tpu.matmul %3, %4, %cst {dimension_numbers = #tpu.dot_dimension_numbers<[1], [0], [0], [1], [0, 0, 1, 1], [], []>} : vector<16x128xbf16>, vector<128x128xbf16>, vector<16x128xf32> -> vector<16x128xf32>
    %cst_4 = arith.constant 0.000000e+00 : f32
    %6 = vector.broadcast %cst_4 : f32 to vector<16x128xf32>
    %7 = arith.maximumf %5, %6 : vector<16x128xf32>
    %8 = tpu.iota {dimensions = array<i32: 0>} : vector<16x128xi32>
    %9 = vector.broadcast %1 : i32 to vector<16x128xi32>
    %10 = arith.addi %8, %9 : vector<16x128xi32>
    %11 = tpu.iota {dimensions = array<i32: 1>} : vector<16x128xi32>
    %c128_i32 = arith.constant 128 : i32
    %12 = vector.broadcast %c128_i32 : i32 to vector<16x128xi32>
    %13 = arith.muli %10, %12 : vector<16x128xi32>
    %14 = arith.addi %13, %11 : vector<16x128xi32>
    %c-1640531527_i32 = arith.constant -1640531527 : i32
    %15 = arith.muli %0, %c-1640531527_i32 : i32
    %16 = vector.broadcast %15 : i32 to vector<16x128xi32>
    %17 = arith.addi %14, %16 : vector<16x128xi32>
    %c-1640531527_i32_5 = arith.constant -1640531527 : i32
    %18 = vector.broadcast %c-1640531527_i32_5 : i32 to vector<16x128xi32>
    %19 = arith.addi %17, %18 : vector<16x128xi32>
    %c16_i32_6 = arith.constant 16 : i32
    %20 = vector.broadcast %c16_i32_6 : i32 to vector<16x128xi32>
    %21 = arith.shrsi %19, %20 : vector<16x128xi32>
    %c65535_i32 = arith.constant 65535 : i32
    %22 = vector.broadcast %c65535_i32 : i32 to vector<16x128xi32>
    %23 = arith.andi %21, %22 : vector<16x128xi32>
    %24 = arith.xori %19, %23 : vector<16x128xi32>
    %c-2048144789_i32 = arith.constant -2048144789 : i32
    %25 = vector.broadcast %c-2048144789_i32 : i32 to vector<16x128xi32>
    %26 = arith.muli %24, %25 : vector<16x128xi32>
    %c13_i32 = arith.constant 13 : i32
    %27 = vector.broadcast %c13_i32 : i32 to vector<16x128xi32>
    %28 = arith.shrsi %26, %27 : vector<16x128xi32>
    %c524287_i32 = arith.constant 524287 : i32
    %29 = vector.broadcast %c524287_i32 : i32 to vector<16x128xi32>
    %30 = arith.andi %28, %29 : vector<16x128xi32>
    %31 = arith.xori %26, %30 : vector<16x128xi32>
    %c-1028477387_i32 = arith.constant -1028477387 : i32
    %32 = vector.broadcast %c-1028477387_i32 : i32 to vector<16x128xi32>
    %33 = arith.muli %31, %32 : vector<16x128xi32>
    %c16_i32_7 = arith.constant 16 : i32
    %34 = vector.broadcast %c16_i32_7 : i32 to vector<16x128xi32>
    %35 = arith.shrsi %33, %34 : vector<16x128xi32>
    %c65535_i32_8 = arith.constant 65535 : i32
    %36 = vector.broadcast %c65535_i32_8 : i32 to vector<16x128xi32>
    %37 = arith.andi %35, %36 : vector<16x128xi32>
    %38 = arith.xori %33, %37 : vector<16x128xi32>
    %c0_i32 = arith.constant 0 : i32
    %39 = vector.broadcast %c0_i32 : i32 to vector<16x128xi32>
    %40 = arith.cmpi sge, %38, %39 : vector<16x128xi32>
    %41 = arith.addf %7, %7 : vector<16x128xf32>
    %cst_9 = arith.constant 0.000000e+00 : f32
    %42 = vector.broadcast %cst_9 : f32 to vector<16x128xf32>
    %43 = arith.select %40, %41, %42 : vector<16x128xi1>, vector<16x128xf32>
    %44 = arith.truncf %43 : vector<16x128xf32> to vector<16x128xbf16>
    %c0_10 = arith.constant 0 : index
    %c0_11 = arith.constant 0 : index
    %45 = vector.load %arg4[%c0_10, %c0_11] : memref<128x128xbf16, #tpu.memory_space<vmem>>, vector<128x128xbf16>
    %cst_12 = arith.constant dense<0.000000e+00> : vector<16x128xf32>
    %46 = tpu.matmul %44, %45, %cst_12 {dimension_numbers = #tpu.dot_dimension_numbers<[1], [0], [0], [1], [0, 0, 1, 1], [], []>} : vector<16x128xbf16>, vector<128x128xbf16>, vector<16x128xf32> -> vector<16x128xf32>
    %cst_13 = arith.constant 0.000000e+00 : f32
    %47 = vector.broadcast %cst_13 : f32 to vector<16x128xf32>
    %48 = arith.maximumf %46, %47 : vector<16x128xf32>
    %49 = tpu.iota {dimensions = array<i32: 0>} : vector<16x128xi32>
    %50 = vector.broadcast %1 : i32 to vector<16x128xi32>
    %51 = arith.addi %49, %50 : vector<16x128xi32>
    %52 = tpu.iota {dimensions = array<i32: 1>} : vector<16x128xi32>
    %c128_i32_14 = arith.constant 128 : i32
    %53 = vector.broadcast %c128_i32_14 : i32 to vector<16x128xi32>
    %54 = arith.muli %51, %53 : vector<16x128xi32>
    %55 = arith.addi %54, %52 : vector<16x128xi32>
    %c-1640531527_i32_15 = arith.constant -1640531527 : i32
    %56 = arith.muli %0, %c-1640531527_i32_15 : i32
    %57 = vector.broadcast %56 : i32 to vector<16x128xi32>
    %58 = arith.addi %55, %57 : vector<16x128xi32>
    %c1013904242_i32 = arith.constant 1013904242 : i32
    %59 = vector.broadcast %c1013904242_i32 : i32 to vector<16x128xi32>
    %60 = arith.addi %58, %59 : vector<16x128xi32>
    %c16_i32_16 = arith.constant 16 : i32
    %61 = vector.broadcast %c16_i32_16 : i32 to vector<16x128xi32>
    %62 = arith.shrsi %60, %61 : vector<16x128xi32>
    %c65535_i32_17 = arith.constant 65535 : i32
    %63 = vector.broadcast %c65535_i32_17 : i32 to vector<16x128xi32>
    %64 = arith.andi %62, %63 : vector<16x128xi32>
    %65 = arith.xori %60, %64 : vector<16x128xi32>
    %c-2048144789_i32_18 = arith.constant -2048144789 : i32
    %66 = vector.broadcast %c-2048144789_i32_18 : i32 to vector<16x128xi32>
    %67 = arith.muli %65, %66 : vector<16x128xi32>
    %c13_i32_19 = arith.constant 13 : i32
    %68 = vector.broadcast %c13_i32_19 : i32 to vector<16x128xi32>
    %69 = arith.shrsi %67, %68 : vector<16x128xi32>
    %c524287_i32_20 = arith.constant 524287 : i32
    %70 = vector.broadcast %c524287_i32_20 : i32 to vector<16x128xi32>
    %71 = arith.andi %69, %70 : vector<16x128xi32>
    %72 = arith.xori %67, %71 : vector<16x128xi32>
    %c-1028477387_i32_21 = arith.constant -1028477387 : i32
    %73 = vector.broadcast %c-1028477387_i32_21 : i32 to vector<16x128xi32>
    %74 = arith.muli %72, %73 : vector<16x128xi32>
    %c16_i32_22 = arith.constant 16 : i32
    %75 = vector.broadcast %c16_i32_22 : i32 to vector<16x128xi32>
    %76 = arith.shrsi %74, %75 : vector<16x128xi32>
    %c65535_i32_23 = arith.constant 65535 : i32
    %77 = vector.broadcast %c65535_i32_23 : i32 to vector<16x128xi32>
    %78 = arith.andi %76, %77 : vector<16x128xi32>
    %79 = arith.xori %74, %78 : vector<16x128xi32>
    %c0_i32_24 = arith.constant 0 : i32
    %80 = vector.broadcast %c0_i32_24 : i32 to vector<16x128xi32>
    %81 = arith.cmpi sge, %79, %80 : vector<16x128xi32>
    %82 = arith.addf %48, %48 : vector<16x128xf32>
    %cst_25 = arith.constant 0.000000e+00 : f32
    %83 = vector.broadcast %cst_25 : f32 to vector<16x128xf32>
    %84 = arith.select %81, %82, %83 : vector<16x128xi1>, vector<16x128xf32>
    %c0_26 = arith.constant 0 : index
    %c0_27 = arith.constant 0 : index
    %85 = vector.load %arg5[%c0_26, %c0_27] : memref<16x128xf32, #tpu.memory_space<vmem>>, vector<16x128xf32>
    tpu.vector_store %arg5[%c0_26, %c0_27], %84 {strides = array<i32>} : memref<16x128xf32, #tpu.memory_space<vmem>>, vector<16x128xf32>,
    return
  }
  func.func @transform_0(%arg0: i32, %arg1: memref<1xi32, #tpu.memory_space<smem>>) -> (i32, i32) {
    %c0_i32 = arith.constant 0 : i32
    %c0_i32_0 = arith.constant 0 : i32
    return %arg0, %c0_i32 : i32, i32
  }
  func.func @transform_1(%arg0: i32, %arg1: memref<1xi32, #tpu.memory_space<smem>>) -> (i32, i32) {
    %c0_i32 = arith.constant 0 : i32
    %c0_i32_0 = arith.constant 0 : i32
    %c0_i32_1 = arith.constant 0 : i32
    return %c0_i32, %c0_i32_0 : i32, i32
  }
  func.func @transform_2(%arg0: i32, %arg1: memref<1xi32, #tpu.memory_space<smem>>) -> (i32, i32) {
    %c0_i32 = arith.constant 0 : i32
    %c0_i32_0 = arith.constant 0 : i32
    %c0_i32_1 = arith.constant 0 : i32
    return %c0_i32, %c0_i32_0 : i32, i32
  }
  func.func @transform_3(%arg0: i32, %arg1: memref<1xi32, #tpu.memory_space<smem>>) -> (i32, i32) {
    %c0_i32 = arith.constant 0 : i32
    %c0_i32_0 = arith.constant 0 : i32
    return %arg0, %c0_i32 : i32, i32
  }
}

</mosaic_0001>

<llo_original>
// kernel: tpu_custom_call.1
$region0: #{tpu_custom_call.1}
  #allocation0 [shape = 'u32[]', space=smem, size = 0x4, offset = 0x4, fixed_abs, tag = 'smem constant byte address 0x4 - core index']
  #allocation1 [shape = 'u32[144,128]{1,0:T(1,128)}', space=vmem, size = 0x12000, scoped, tag = 'internal scratch']
  #allocation2 [shape = 's32[1]{0}', space=sflag, size = 0x4, scoped, tag = 'scoped memory for tpu_custom_call.1']
  #allocation3 [shape = 's32[1]{0:T(128)S(6)}', space=smem, size = 0x200, scoped, tag = 'prefetched SMEM operand 0']
  %s0 = inlined_call_operand.<no memory space> [shape: s32[1], index: 0, kind: input, shape index: {}]
  %s1 = inlined_call_operand.hbm [shape: f32[16,128], index: 1, kind: input, shape index: {}]
  %s2 = inlined_call_operand.hbm [shape: bf16[128,128], index: 2, kind: input, shape index: {}]
  %s3 = inlined_call_operand.hbm [shape: bf16[128,128], index: 3, kind: input, shape index: {}]
  %s4 = inlined_call_operand.hbm [shape: f32[16,128], index: 4, kind: output, shape index: {}]
  %s5 = sld [smem:[#allocation0]]
  $region34: #{tpu_custom_call.1} parent=0
    _
  %s7 = ssub.s32 1, %s5
  %s8 = scalar_select 0, %s7, %s5
  %9 = sst [smem:[#allocation3]] %s0
  $region1: #{tpu_custom_call.1} parent=0
    #allocation4 [shape = 'u8[8192]{0}', space=vmem, size = 0x2000, scoped, tag = 'input window, operand 1, single buffered']
    #allocation5 [shape = 's32[1]{0}', space=sflag, size = 0x4, scoped, tag = 'scoped memory for tpu_custom_call.1']
    #allocation6 [shape = 's32[1]{0}', space=sflag, size = 0x4, scoped, tag = 'scoped memory for tpu_custom_call.1']
    #allocation7 [shape = 'u8[32768]{0}', space=vmem, size = 0x8000, scoped, tag = 'input window, operand 2, single buffered']
    #allocation8 [shape = 's32[1]{0}', space=sflag, size = 0x4, scoped, tag = 'scoped memory for tpu_custom_call.1']
    #allocation9 [shape = 'u8[32768]{0}', space=vmem, size = 0x8000, scoped, tag = 'input window, operand 3, single buffered']
    #allocation10 [shape = 'u8[8192]{0}', space=vmem, size = 0x2000, scoped, tag = 'output window, operand 0, single buffered']
    %10 = vsyncpa [#allocation5], 0
    %11 = vsyncpa [#allocation8], 0
    %12 = vsyncpa [#allocation6], 0
    // Predicated region
    $region2: #{tpu_custom_call.1} parent=1 // pred_check
      _
    $region3: #{tpu_custom_call.1} parent=1 // pred_check_branch
      %14 = sbr.rel (0) target = $region5
    $region4: #{tpu_custom_call.1} parent=1 // pred_region
      %s16 = ssub.s32 256, 256
      %17 = vsyncadd [#allocation5], %s16
      %s18 = sshll.u32 [#allocation4], 4
      %s19 = int_to_ptr.vmem [resolvable:$true] %s18
      %24 = dma.hbm_to_vmem [thread:$0]  %s1, 256, %s19, [#allocation5], 128, 128, 8
    $region5: #{tpu_custom_call.1} parent=1 // pred_fallthru
      _
    // Predicated region
    $region6: #{tpu_custom_call.1} parent=1 // pred_check
      _
    $region7: #{tpu_custom_call.1} parent=1 // pred_check_branch
      %26 = sbr.rel (0) target = $region9
    $region8: #{tpu_custom_call.1} parent=1 // pred_region
      %s28 = ssub.s32 1024, 1024
      %29 = vsyncadd [#allocation8], %s28
      %s30 = sshll.u32 [#allocation7], 4
      %s31 = int_to_ptr.vmem [resolvable:$true] %s30
      %36 = dma.hbm_to_vmem [thread:$0]  %s2, 1024, %s31, [#allocation8], 64, 64, 4
    $region9: #{tpu_custom_call.1} parent=1 // pred_fallthru
      _
    // Predicated region
    $region10: #{tpu_custom_call.1} parent=1 // pred_check
      _
    $region11: #{tpu_custom_call.1} parent=1 // pred_check_branch
      %38 = sbr.rel (0) target = $region13
    $region12: #{tpu_custom_call.1} parent=1 // pred_region
      %s40 = ssub.s32 1024, 1024
      %41 = vsyncadd [#allocation8], %s40
      %s42 = sshll.u32 [#allocation9], 4
      %s43 = int_to_ptr.vmem [resolvable:$true] %s42
      %48 = dma.hbm_to_vmem [thread:$0]  %s3, 1024, %s43, [#allocation8], 64, 64, 4
    $region13: #{tpu_custom_call.1} parent=1 // pred_fallthru
      _
    // Predicated region
    $region14: #{tpu_custom_call.1} parent=1 // pred_check
      _
    $region15: #{tpu_custom_call.1} parent=1 // pred_check_branch
      %50 = sbr.rel (0) target = $region17
    $region16: #{tpu_custom_call.1} parent=1 // pred_region
      %51 = dma.done [#allocation5], 256
    $region17: #{tpu_custom_call.1} parent=1 // pred_fallthru
      _
    // Predicated region
    $region18: #{tpu_custom_call.1} parent=1 // pred_check
      _
    $region19: #{tpu_custom_call.1} parent=1 // pred_check_branch
      %53 = sbr.rel (0) target = $region21
    $region20: #{tpu_custom_call.1} parent=1 // pred_region
      %54 = dma.done [#allocation8], 1024
    $region21: #{tpu_custom_call.1} parent=1 // pred_fallthru
      _
    // Predicated region
    $region22: #{tpu_custom_call.1} parent=1 // pred_check
      _
    $region23: #{tpu_custom_call.1} parent=1 // pred_check_branch
      %56 = sbr.rel (0) target = $region25
    $region24: #{tpu_custom_call.1} parent=1 // pred_region
      %57 = dma.done [#allocation8], 1024
    $region25: #{tpu_custom_call.1} parent=1 // pred_fallthru
      _
    %s59 = sld [smem:[#allocation3]]
    %s60 = smul.u32 0, 16
    %v61 = vld [vmem:[#allocation4] sm:$0xff]
    %v62 = vld [vmem:[#allocation4 + $0x8] sm:$0xff]
    %v63 = vpack.c.bf16 %v62, %v61
    %v64 = vld [vmem:[#allocation7] sm:$0xf]
    %v65 = vld [vmem:[#allocation7 + $0x4] sm:$0xf]
    %v66 = vld [vmem:[#allocation7 + $0x8] sm:$0xf]
    %v67 = vld [vmem:[#allocation7 + $0xc] sm:$0xf]
    %v68 = vld [vmem:[#allocation7 + $0x10] sm:$0xf]
    %v69 = vld [vmem:[#allocation7 + $0x14] sm:$0xf]
    %v70 = vld [vmem:[#allocation7 + $0x18] sm:$0xf]
    %v71 = vld [vmem:[#allocation7 + $0x1c] sm:$0xf]
    %v72 = vld [vmem:[#allocation7 + $0x20] sm:$0xf]
    %v73 = vld [vmem:[#allocation7 + $0x24] sm:$0xf]
    %v74 = vld [vmem:[#allocation7 + $0x28] sm:$0xf]
    %v75 = vld [vmem:[#allocation7 + $0x2c] sm:$0xf]
    %v76 = vld [vmem:[#allocation7 + $0x30] sm:$0xf]
    %v77 = vld [vmem:[#allocation7 + $0x34] sm:$0xf]
    %v78 = vld [vmem:[#allocation7 + $0x38] sm:$0xf]
    %v79 = vld [vmem:[#allocation7 + $0x3c] sm:$0xf]
    %v96 = vunpack.c.l.b16 %v64
    %v97 = vunpack.c.l.b16 %v65
    %v98 = vunpack.c.l.b16 %v66
    %v99 = vunpack.c.l.b16 %v67
    %v100 = vunpack.c.l.b16 %v68
    %v101 = vunpack.c.l.b16 %v69
    %v102 = vunpack.c.l.b16 %v70
    %v103 = vunpack.c.l.b16 %v71
    %v104 = vunpack.c.l.b16 %v72
    %v105 = vunpack.c.l.b16 %v73
    %v106 = vunpack.c.l.b16 %v74
    %v107 = vunpack.c.l.b16 %v75
    %v108 = vunpack.c.l.b16 %v76
    %v109 = vunpack.c.l.b16 %v77
    %v110 = vunpack.c.l.b16 %v78
    %v111 = vunpack.c.l.b16 %v79
    %v112 = vpack.c.b16 %v97, %v96
    %v113 = vpack.c.b16 %v99, %v98
    %v114 = vpack.c.b16 %v101, %v100
    %v115 = vpack.c.b16 %v103, %v102
    %v116 = vpack.c.b16 %v105, %v104
    %v117 = vpack.c.b16 %v107, %v106
    %v118 = vpack.c.b16 %v109, %v108
    %v119 = vpack.c.b16 %v111, %v110
    %128 = vmatprep.subr.bf16.mxu0 0
    %129 = vmatpush1.bf16.msra.mxu0 %v119
    %130 = vmatprep.subr.bf16.mxu0 0
    %131 = vmatpush1.bf16.msra.mxu0 %v118
    %132 = vmatprep.subr.bf16.mxu0 0
    %133 = vmatpush1.bf16.msra.mxu0 %v117
    %134 = vmatprep.subr.bf16.mxu0 0
    %135 = vmatpush1.bf16.msra.mxu0 %v116
    %136 = vmatprep.subr.bf16.mxu0 0
    %137 = vmatpush1.bf16.msra.mxu0 %v115
    %138 = vmatprep.subr.bf16.mxu0 0
    %139 = vmatpush1.bf16.msra.mxu0 %v114
    %140 = vmatprep.subr.bf16.mxu0 0
    %141 = vmatpush1.bf16.msra.mxu0 %v113
    %142 = vmatprep.subr.bf16.mxu0 0
    %143 = vmatpush1.bf16.msra.mxu0 %v112
    %144 = vmatprep.subr.bf16.mxu0 0
    %145 = vmatpush2.bf16.msra.mxu0 0
    %146 = vmatprep.subr.bf16.mxu0 0
    %147 = vmatpush2.bf16.msra.mxu0 0
    %148 = vmatprep.subr.bf16.mxu0 0
    %149 = vmatpush2.bf16.msra.mxu0 0
    %150 = vmatprep.subr.bf16.mxu0 0
    %151 = vmatpush2.bf16.msra.mxu0 0
    %152 = vmatprep.subr.bf16.mxu0 0
    %153 = vmatpush2.bf16.msra.mxu0 0
    %154 = vmatprep.subr.bf16.mxu0 0
    %155 = vmatpush2.bf16.msra.mxu0 0
    %156 = vmatprep.subr.bf16.mxu0 0
    %157 = vmatpush2.bf16.msra.mxu0 0
    %158 = vmatprep.subr.bf16.mxu0 0
    %159 = vmatpush2.bf16.msra.mxu0 0
    %160 = vmatprep.mubr.bf16.mxu0 0
    %161 = vmatmul.mubr.bf16.gmra.mxu0 %v63
    %v162 = vpop.f32.mrf.mxu0
    %v163 = vadd.f32 0.0, %v162
    %v164 = vpop.f32.mrf.mxu0
    %v165 = vpop.f32.mrf.mxu0
    %v166 = vadd.f32 0.0, %v165
    %v167 = vpop.f32.mrf.mxu0
    %168 = vdwg.mxu0
    %v169 = vmax.f32 %v163, 0.0
    %v170 = vmax.f32 %v166, 0.0
    %v171 = vlaneseq
    %v172 = vshrl.u32 %v171, 7
    %v173 = vadd.s32 %v172, 8
    %v174 = vstv %s60
    %v175 = vadd.s32 %v172, %v174
    %v176 = vadd.s32 %v173, %v174
    %v177 = vlaneseq
    %v178 = vand.u32 %v177, 127
    %v179 = vmul.u32 %v175, 128
    %v180 = vmul.u32 %v176, 128
    %v181 = vadd.s32 %v179, %v178
    %v182 = vadd.s32 %v180, %v178
    %s183 = smul.u32 %s59, 2654435769
    %v184 = vstv %s183
    %v185 = vadd.s32 %v181, %v184
    %v186 = vadd.s32 %v182, %v184
    %v187 = vadd.s32 %v185, 2654435769
    %v188 = vadd.s32 %v186, 2654435769
    %v189 = vshra.s32 %v187, 16
    %v190 = vshra.s32 %v188, 16
    %v191 = vand.u32 %v189, 65535
    %v192 = vand.u32 %v190, 65535
    %v193 = vxor.u32 %v187, %v191
    %v194 = vxor.u32 %v188, %v192
    %v195 = vmul.u32 %v193, 2246822507
    %v196 = vmul.u32 %v194, 2246822507
    %v197 = vshra.s32 %v195, 13
    %v198 = vshra.s32 %v196, 13
    %v199 = vand.u32 %v197, 524287
    %v200 = vand.u32 %v198, 524287
    %v201 = vxor.u32 %v195, %v199
    %v202 = vxor.u32 %v196, %v200
    %v203 = vmul.u32 %v201, 3266489909
    %v204 = vmul.u32 %v202, 3266489909
    %v205 = vshra.s32 %v203, 16
    %v206 = vshra.s32 %v204, 16
    %v207 = vand.u32 %v205, 65535
    %v208 = vand.u32 %v206, 65535
    %v209 = vxor.u32 %v203, %v207
    %v210 = vxor.u32 %v204, %v208
    %vm211 = vcmp.ge.s32.totalorder %v209, 0
    %vm212 = vcmp.ge.s32.totalorder %v210, 0
    %v213 = vadd.f32 %v169, %v169
    %v214 = vadd.f32 %v170, %v170
    %v215 = vsel %vm211, %v213, 0.0
    %v216 = vsel %vm212, %v214, 0.0
    %v217 = vpack.c.bf16 %v216, %v215
    %v218 = vld [vmem:[#allocation9] sm:$0xf]
    %v219 = vld [vmem:[#allocation9 + $0x4] sm:$0xf]
    %v220 = vld [vmem:[#allocation9 + $0x8] sm:$0xf]
    %v221 = vld [vmem:[#allocation9 + $0xc] sm:$0xf]
    %v222 = vld [vmem:[#allocation9 + $0x10] sm:$0xf]
    %v223 = vld [vmem:[#allocation9 + $0x14] sm:$0xf]
    %v224 = vld [vmem:[#allocation9 + $0x18] sm:$0xf]
    %v225 = vld [vmem:[#allocation9 + $0x1c] sm:$0xf]
    %v226 = vld [vmem:[#allocation9 + $0x20] sm:$0xf]
    %v227 = vld [vmem:[#allocation9 + $0x24] sm:$0xf]
    %v228 = vld [vmem:[#allocation9 + $0x28] sm:$0xf]
    %v229 = vld [vmem:[#allocation9 + $0x2c] sm:$0xf]
    %v230 = vld [vmem:[#allocation9 + $0x30] sm:$0xf]
    %v231 = vld [vmem:[#allocation9 + $0x34] sm:$0xf]
    %v232 = vld [vmem:[#allocation9 + $0x38] sm:$0xf]
    %v233 = vld [vmem:[#allocation9 + $0x3c] sm:$0xf]
    %v250 = vunpack.c.l.b16 %v218
    %v251 = vunpack.c.l.b16 %v219
    %v252 = vunpack.c.l.b16 %v220
    %v253 = vunpack.c.l.b16 %v221
    %v254 = vunpack.c.l.b16 %v222
    %v255 = vunpack.c.l.b16 %v223
    %v256 = vunpack.c.l.b16 %v224
    %v257 = vunpack.c.l.b16 %v225
    %v258 = vunpack.c.l.b16 %v226
    %v259 = vunpack.c.l.b16 %v227
    %v260 = vunpack.c.l.b16 %v228
    %v261 = vunpack.c.l.b16 %v229
    %v262 = vunpack.c.l.b16 %v230
    %v263 = vunpack.c.l.b16 %v231
    %v264 = vunpack.c.l.b16 %v232
    %v265 = vunpack.c.l.b16 %v233
    %v266 = vpack.c.b16 %v251, %v250
    %v267 = vpack.c.b16 %v253, %v252
    %v268 = vpack.c.b16 %v255, %v254
    %v269 = vpack.c.b16 %v257, %v256
    %v270 = vpack.c.b16 %v259, %v258
    %v271 = vpack.c.b16 %v261, %v260
    %v272 = vpack.c.b16 %v263, %v262
    %v273 = vpack.c.b16 %v265, %v264
    %282 = vmatprep.subr.bf16.mxu0 0
    %283 = vmatpush1.bf16.msra.mxu0 %v273
    %284 = vmatprep.subr.bf16.mxu0 0
    %285 = vmatpush1.bf16.msra.mxu0 %v272
    %286 = vmatprep.subr.bf16.mxu0 0
    %287 = vmatpush1.bf16.msra.mxu0 %v271
    %288 = vmatprep.subr.bf16.mxu0 0
    %289 = vmatpush1.bf16.msra.mxu0 %v270
    %290 = vmatprep.subr.bf16.mxu0 0
    %291 = vmatpush1.bf16.msra.mxu0 %v269
    %292 = vmatprep.subr.bf16.mxu0 0
    %293 = vmatpush1.bf16.msra.mxu0 %v268
    %294 = vmatprep.subr.bf16.mxu0 0
    %295 = vmatpush1.bf16.msra.mxu0 %v267
    %296 = vmatprep.subr.bf16.mxu0 0
    %297 = vmatpush1.bf16.msra.mxu0 %v266
    %298 = vmatprep.subr.bf16.mxu0 0
    %299 = vmatpush2.bf16.msra.mxu0 0
    %300 = vmatprep.subr.bf16.mxu0 0
    %301 = vmatpush2.bf16.msra.mxu0 0
    %302 = vmatprep.subr.bf16.mxu0 0
    %303 = vmatpush2.bf16.msra.mxu0 0
    %304 = vmatprep.subr.bf16.mxu0 0
    %305 = vmatpush2.bf16.msra.mxu0 0
    %306 = vmatprep.subr.bf16.mxu0 0
    %307 = vmatpush2.bf16.msra.mxu0 0
    %308 = vmatprep.subr.bf16.mxu0 0
    %309 = vmatpush2.bf16.msra.mxu0 0
    %310 = vmatprep.subr.bf16.mxu0 0
    %311 = vmatpush2.bf16.msra.mxu0 0
    %312 = vmatprep.subr.bf16.mxu0 0
    %313 = vmatpush2.bf16.msra.mxu0 0
    %314 = vmatprep.mubr.bf16.mxu0 0
    %315 = vmatmul.mubr.bf16.gmra.mxu0 %v217
    %v316 = vpop.f32.mrf.mxu0
    %v317 = vadd.f32 0.0, %v316
    %v318 = vpop.f32.mrf.mxu0
    %v319 = vpop.f32.mrf.mxu0
    %v320 = vadd.f32 0.0, %v319
    %v321 = vpop.f32.mrf.mxu0
    %322 = vdwg.mxu0
    %v323 = vmax.f32 %v317, 0.0
    %v324 = vmax.f32 %v320, 0.0
    %v325 = vadd.s32 %v185, 1013904242
    %v326 = vadd.s32 %v186, 1013904242
    %v327 = vshra.s32 %v325, 16
    %v328 = vshra.s32 %v326, 16
    %v329 = vand.u32 %v327, 65535
    %v330 = vand.u32 %v328, 65535
    %v331 = vxor.u32 %v325, %v329
    %v332 = vxor.u32 %v326, %v330
    %v333 = vmul.u32 %v331, 2246822507
    %v334 = vmul.u32 %v332, 2246822507
    %v335 = vshra.s32 %v333, 13
    %v336 = vshra.s32 %v334, 13
    %v337 = vand.u32 %v335, 524287
    %v338 = vand.u32 %v336, 524287
    %v339 = vxor.u32 %v333, %v337
    %v340 = vxor.u32 %v334, %v338
    %v341 = vmul.u32 %v339, 3266489909
    %v342 = vmul.u32 %v340, 3266489909
    %v343 = vshra.s32 %v341, 16
    %v344 = vshra.s32 %v342, 16
    %v345 = vand.u32 %v343, 65535
    %v346 = vand.u32 %v344, 65535
    %v347 = vxor.u32 %v341, %v345
    %v348 = vxor.u32 %v342, %v346
    %vm349 = vcmp.ge.s32.totalorder %v347, 0
    %vm350 = vcmp.ge.s32.totalorder %v348, 0
    %v351 = vadd.f32 %v323, %v323
    %v352 = vadd.f32 %v324, %v324
    %v353 = vsel %vm349, %v351, 0.0
    %v354 = vsel %vm350, %v352, 0.0
    %355 = vst [vmem:[#allocation10] sm:$0xff] %v353
    %356 = vst [vmem:[#allocation10 + $0x8] sm:$0xff] %v354
    // Predicated region
    $region26: #{tpu_custom_call.1} parent=1 // pred_check
      _
    $region27: #{tpu_custom_call.1} parent=1 // pred_check_branch
      %358 = sbr.rel (0) target = $region29
    $region28: #{tpu_custom_call.1} parent=1 // pred_region
      %s360 = ssub.s32 256, 256
      %361 = vsyncadd [#allocation6], %s360
      %s362 = sshll.u32 [#allocation10], 4
      %s363 = int_to_ptr.vmem [resolvable:$true] %s362
      %368 = dma.vmem_to_hbm [thread:$0]  %s363, 256, %s4, [#allocation6], 128, 128, 8
    $region29: #{tpu_custom_call.1} parent=1 // pred_fallthru
      _
    // Predicated region
    $region30: #{tpu_custom_call.1} parent=1 // pred_check
      _
    $region31: #{tpu_custom_call.1} parent=1 // pred_check_branch
      %370 = sbr.rel (0) target = $region33
    $region32: #{tpu_custom_call.1} parent=1 // pred_region
      %371 = dma.done [#allocation6], 256
    $region33: #{tpu_custom_call.1} parent=1 // pred_fallthru
      _
    %372 = vsyncpa [#allocation5], 1
    %373 = vsyncpa [#allocation8], 1
    %374 = vsyncpa [#allocation6], 1

</llo_original>
